<compile_context>
chip_gen: v6e
topology: v6e:2x2x1
jax: 0.10.0
libtpu: 0.0.40
codegen_flags: <defaults>
</compile_context>

<pallas_src>
import functools
import math

import jax
import jax.numpy as jnp
from jax.experimental import pallas as pl
from jax.experimental.pallas import tpu as pltpu


def _round_up(x, m):
    return ((x + m - 1) // m) * m


# ---------------------------------------------------------------------------
# Kernel 1: feature transform   xw = (X / sqrt(deg)) @ W^T    (bf16 output)
# ---------------------------------------------------------------------------
def _transform_kernel(x_ref, inv_ref, w_ref, xw_ref):
    xs = (x_ref[...] * inv_ref[...]).astype(jnp.bfloat16)                 # [TT, Fi]
    xw_ref[...] = jnp.dot(xs, w_ref[...],
                          preferred_element_type=jnp.float32).astype(xw_ref.dtype)


# ---------------------------------------------------------------------------
# Kernel 2: aggregation   H = relu( (A @ xw) / sqrt(deg) + b )
#   grid = (row tiles, k reduction tiles); int8 A streamed & cast to bf16 in
#   kernel; f32 VMEM accumulator; epilogue (scale + bias + ReLU) on last k.
# ---------------------------------------------------------------------------
def _aggregate_kernel(adj_ref, xw_ref, inv_ref, b_ref, o_ref, acc_ref,
                      *, tk, xw_resident):
    k = pl.program_id(1)

    @pl.when(k == 0)
    def _():
        acc_ref[...] = jnp.zeros_like(acc_ref)

    a = adj_ref[...].astype(jnp.bfloat16)         # 0/1 int8 -> exact; VPU cast hidden under DMA
    if xw_resident:
        off = pl.multiple_of(k * tk, tk)          # slice the resident xw slab
        xw = xw_ref[pl.ds(off, tk), :]
    else:
        xw = xw_ref[...]
    acc_ref[...] += jnp.dot(a, xw, preferred_element_type=jnp.float32)

    @pl.when(k == pl.num_programs(1) - 1)
    def _():
        h = acc_ref[...] * inv_ref[...] + b_ref[...]
        o_ref[...] = jnp.maximum(h, 0.0).astype(o_ref.dtype)


# ---------------------------------------------------------------------------
# Graph preprocessing (ONE-TIME per graph; not in the per-layer hot path)
# ---------------------------------------------------------------------------
def _pick_tiles(N, tm, tk):
    n128 = _round_up(max(N, 8), 128)
    tr = min(tm, n128)
    tkk = min(tk, n128)
    # v7x has 2 TensorCores: keep >= 2 row tiles when the graph allows it.
    if n128 // tr < 2 and n128 >= 256:
        tr = _round_up(n128 // 2, 128)
    return tr, tkk


def prepare_gcn_graph(adj, *, tm=512, tk=512):
    """adj: [N,N] f32 dense adjacency with self-loops (0/1).
    Returns padded int8 adjacency + degree normalization, done once per graph."""
    N = adj.shape[0]
    tr, tkc = _pick_tiles(N, tm, tk)
    n_r = _round_up(N, tr)           # rows / destination nodes
    n_c = _round_up(N, tkc)          # cols / source nodes (k-reduction dim)

    deg = jnp.maximum(jnp.sum(adj, axis=1, keepdims=True), 1.0)   # in-degrees
    inv = jax.lax.rsqrt(deg)                                      # [N, 1]

    adj_i8 = jnp.zeros((n_r, n_c), jnp.int8).at[:N, :N].set(adj.astype(jnp.int8))
    inv_r = jnp.ones((n_r, 1), jnp.float32).at[:N, :].set(inv)    # post-scale rows
    inv_c = jnp.ones((n_c, 1), jnp.float32).at[:N, :].set(inv)    # pre-scale of X
    return dict(adj_i8=adj_i8, inv_r=inv_r, inv_c=inv_c, n=N, tr=tr, tk=tkc)


# ---------------------------------------------------------------------------
# Per-layer forward (hot path; only O(N*F) padding here)
# ---------------------------------------------------------------------------
def gcn_layer(graph, x, w_t, bias):
    """graph: output of prepare_gcn_graph; x: [N,Fin] f32;
    w_t: [Fin,Fout] f32 (Linear weight transposed); bias: [Fout] f32."""
    adj_i8, inv_r, inv_c = graph["adj_i8"], graph["inv_r"], graph["inv_c"]
    N, tr, tk = graph["n"], graph["tr"], graph["tk"]
    n_r, n_c = adj_i8.shape
    f_in = x.shape[1]
    f_out = w_t.shape[1]
    fi_p = _round_up(f_in, 128)
    fo_p = _round_up(f_out, 128)

    x_p = jnp.zeros((n_c, fi_p), jnp.float32).at[:N, :f_in].set(x)
    w_p = jnp.zeros((fi_p, fo_p), jnp.bfloat16).at[:f_in, :f_out].set(
        w_t.astype(jnp.bfloat16))
    b_p = jnp.zeros((1, fo_p), jnp.float32).at[:, :f_out].set(bias[None, :])

    # ---- kernel 1: row-tiled feature transform (small next to A) ----
    tt = tk  # divides n_c by construction
    xw = pl.pallas_call(
        _transform_kernel,
        out_shape=jax.ShapeDtypeStruct((n_c, fo_p), jnp.bfloat16),
        grid=(n_c // tt,),
        in_specs=[
            pl.BlockSpec((tt, fi_p), lambda i: (i, 0)),
            pl.BlockSpec((tt, 1), lambda i: (i, 0)),
            pl.BlockSpec((fi_p, fo_p), lambda i: (0, 0)),     # W resident
        ],
        out_specs=pl.BlockSpec((tt, fo_p), lambda i: (i, 0)),
        compiler_params=pltpu.CompilerParams(
            dimension_semantics=("parallel",)),
    )(x_p, inv_c, w_p)

    # ---- kernel 2: tiled aggregation; int8 A stream, xw resident if it fits ----
    xw_bytes = n_c * fo_p * 2
    xw_resident = xw_bytes <= (20 << 20)          # fits comfortably even on v7x (64 MiB VMEM)
    if xw_resident:
        xw_spec = pl.BlockSpec((n_c, fo_p), lambda i, k: (0, 0))   # never re-streamed
    else:
        xw_spec = pl.BlockSpec((tk, fo_p), lambda i, k: (k, 0))    # k-tile streaming fallback

    need = (2 * tr * tk                                           # A int8, double-buffered
            + (xw_bytes if xw_resident else 2 * tk * fo_p * 2)    # xw
            + 3 * tr * fo_p * 4                                   # out (2x) + f32 acc
            + 2 * (tr * 4 + fo_p * 4))                            # inv / bias blocks
    vmem_limit = int(min(max(need + (8 << 20), 32 << 20), 64 << 20))

    h = pl.pallas_call(
        functools.partial(_aggregate_kernel, tk=tk, xw_resident=xw_resident),
        out_shape=jax.ShapeDtypeStruct((n_r, fo_p), jnp.float32),
        grid=(n_r // tr, n_c // tk),
        in_specs=[
            pl.BlockSpec((tr, tk), lambda i, k: (i, k)),          # A tile (dominant stream)
            xw_spec,
            pl.BlockSpec((tr, 1), lambda i, k: (i, 0)),           # inv_sqrt_deg rows
            pl.BlockSpec((1, fo_p), lambda i, k: (0, 0)),         # bias (resident)
        ],
        out_specs=pl.BlockSpec((tr, fo_p), lambda i, k: (i, 0)),
        scratch_shapes=[pltpu.VMEM((tr, fo_p), jnp.float32)],
        compiler_params=pltpu.CompilerParams(
            dimension_semantics=("parallel", "arbitrary"),
            vmem_limit_bytes=vmem_limit),
    )(adj_i8, xw, inv_r, b_p)

    return h[:N, :f_out]


if __name__ == "__main__":
    N, in_feats, out_feats = 256, 64, 64
    key = jax.random.PRNGKey(0)
    k_x, k_w, k_a = jax.random.split(key, 3)

    # node features
    x = jax.random.normal(k_x, (N, in_feats), dtype=jnp.float32)

    # Linear weight (no bias) + separate bias parameter (zeros, as in module init)
    bound = 1.0 / math.sqrt(in_feats)
    w = jax.random.uniform(k_w, (out_feats, in_feats),
                           minval=-bound, maxval=bound, dtype=jnp.float32)
    w_t = w.T                                   # [in_feats, out_feats]
    bias = jnp.zeros((out_feats,), dtype=jnp.float32)

    # random directed graph; remove self loops then add self loops -> diag = 1
    rand_adj = (jax.random.uniform(k_a, (N, N)) < 0.1).astype(jnp.float32)
    off_diag = rand_adj * (1.0 - jnp.eye(N, dtype=jnp.float32))
    adj = off_diag + jnp.eye(N, dtype=jnp.float32)

    graph = prepare_gcn_graph(adj)              # one-time per-graph preprocessing
    out = jax.block_until_ready(gcn_layer(graph, x, w_t, bias))
    assert out.shape == (N, out_feats)

    # pure-f32 reference (module semantics)
    deg = jnp.maximum(jnp.sum(adj, axis=1, keepdims=True), 1.0)
    inv = jax.lax.rsqrt(deg)
    ref_f32 = jnp.maximum(adj @ ((x * inv) @ w_t) * inv + bias[None, :], 0.0)

    # matched-precision reference (bf16 MXU operands, f32 accumulation)
    xw_bf = jnp.dot((x * inv).astype(jnp.bfloat16), w_t.astype(jnp.bfloat16),
                    preferred_element_type=jnp.float32).astype(jnp.bfloat16)
    ref_bf = jnp.maximum(
        jnp.dot(adj.astype(jnp.bfloat16), xw_bf,
                preferred_element_type=jnp.float32) * inv + bias[None, :], 0.0)

    assert jnp.allclose(out, ref_bf, atol=2e-2, rtol=2e-2), "mismatch vs matched-precision ref"
    assert jnp.allclose(out, ref_f32, atol=1.5e-1, rtol=5e-2), "mismatch vs f32 ref"
    print("KERNEL_OK")
</pallas_src>

<mosaic_0001>
module attributes {stable_mosaic.version = 11 : i64} {
  func.func @_transform_kernel(%arg0: i32, %arg1: memref<256x128xf32, #tpu.memory_space<vmem>>, %arg2: memref<256x1xf32, #tpu.memory_space<vmem>>, %arg3: memref<128x128xbf16, #tpu.memory_space<vmem>>, %arg4: memref<256x128xbf16, #tpu.memory_space<vmem>>) attributes {dimension_semantics = [#tpu.dimension_semantics<parallel>], iteration_bounds = array<i64: 1>, scalar_prefetch = 0 : i64, scratch_operands = 0 : i64, tpu.core_type = #tpu.core_type<tc>, window_params = [{transform_indices = @transform_0, window_bounds = array<i64: 256, 128>}, {transform_indices = @transform_1, window_bounds = array<i64: 256, 1>}, {pipeline_mode = #tpu.pipeline_mode<synchronous>, transform_indices = @transform_2, window_bounds = array<i64: 128, 128>}, {transform_indices = @transform_3, window_bounds = array<i64: 256, 128>}]} {
    %c0 = arith.constant 0 : index
    %c0_0 = arith.constant 0 : index
    %0 = vector.load %arg1[%c0, %c0_0] : memref<256x128xf32, #tpu.memory_space<vmem>>, vector<256x128xf32>
    %c0_1 = arith.constant 0 : index
    %c0_2 = arith.constant 0 : index
    %1 = vector.load %arg2[%c0_1, %c0_2] : memref<256x1xf32, #tpu.memory_space<vmem>>, vector<256x1xf32>
    %2 = vector.broadcast %1 : vector<256x1xf32> to vector<256x128xf32>
    %3 = arith.mulf %0, %2 : vector<256x128xf32>
    %4 = arith.truncf %3 : vector<256x128xf32> to vector<256x128xbf16>
    %c0_3 = arith.constant 0 : index
    %c0_4 = arith.constant 0 : index
    %5 = vector.load %arg3[%c0_3, %c0_4] : memref<128x128xbf16, #tpu.memory_space<vmem>>, vector<128x128xbf16>
    %cst = arith.constant dense<0.000000e+00> : vector<256x128xf32>
    %6 = tpu.matmul %4, %5, %cst {dimension_numbers = #tpu.dot_dimension_numbers<[1], [0], [0], [1], [0, 0, 1, 1], [], []>} : vector<256x128xbf16>, vector<128x128xbf16>, vector<256x128xf32> -> vector<256x128xf32>
    %7 = arith.truncf %6 : vector<256x128xf32> to vector<256x128xbf16>
    %c0_5 = arith.constant 0 : index
    %c0_6 = arith.constant 0 : index
    %8 = vector.load %arg4[%c0_5, %c0_6] : memref<256x128xbf16, #tpu.memory_space<vmem>>, vector<256x128xbf16>
    tpu.vector_store %arg4[%c0_5, %c0_6], %7 {strides = array<i32>} : memref<256x128xbf16, #tpu.memory_space<vmem>>, vector<256x128xbf16>,
    return
  }
  func.func @transform_0(%arg0: i32) -> (i32, i32) {
    %c0_i32 = arith.constant 0 : i32
    %c0_i32_0 = arith.constant 0 : i32
    return %arg0, %c0_i32 : i32, i32
  }
  func.func @transform_1(%arg0: i32) -> (i32, i32) {
    %c0_i32 = arith.constant 0 : i32
    %c0_i32_0 = arith.constant 0 : i32
    return %arg0, %c0_i32 : i32, i32
  }
  func.func @transform_2(%arg0: i32) -> (i32, i32) {
    %c0_i32 = arith.constant 0 : i32
    %c0_i32_0 = arith.constant 0 : i32
    %c0_i32_1 = arith.constant 0 : i32
    return %c0_i32, %c0_i32_0 : i32, i32
  }
  func.func @transform_3(%arg0: i32) -> (i32, i32) {
    %c0_i32 = arith.constant 0 : i32
    %c0_i32_0 = arith.constant 0 : i32
    return %arg0, %c0_i32 : i32, i32
  }
}

</mosaic_0001>

<llo_original>
// kernel: tpu_custom_call.1
$region0: #{tpu_custom_call.1}
  #allocation0 [shape = 'u32[]', space=smem, size = 0x4, offset = 0x4, fixed_abs, tag = 'smem constant byte address 0x4 - core index']
  #allocation1 [shape = 'u32[144,128]{1,0:T(1,128)}', space=vmem, size = 0x12000, scoped, tag = 'internal scratch']
  %s0 = inlined_call_operand.vmem [shape: f32[256,128], index: 0, kind: input, shape index: {}]
  %s1 = inlined_call_operand.vmem [shape: f32[256,1], index: 1, kind: input, shape index: {}]
  %s2 = inlined_call_operand.hbm [shape: bf16[128,128], index: 2, kind: input, shape index: {}]
  %s3 = inlined_call_operand.hbm [shape: bf16[256,128], index: 3, kind: output, shape index: {}]
  %s4 = sld [smem:[#allocation0]]
  $region26: #{tpu_custom_call.1} parent=0
    _
  %s6 = ssub.s32 1, %s4
  %s7 = scalar_select 0, %s6, %s4
  $region1: #{tpu_custom_call.1} parent=0
    #allocation2 [shape = 'u8[32768]{0}', space=vmem, size = 0x8000, scoped, tag = 'input window, operand 2, single buffered']
    #allocation3 [shape = 's32[1]{0}', space=sflag, size = 0x4, scoped, tag = 'scoped memory for tpu_custom_call.1']
    #allocation4 [shape = 's32[1]{0}', space=sflag, size = 0x4, scoped, tag = 'scoped memory for tpu_custom_call.1']
    #allocation5 [shape = 'u8[65536]{0}', space=vmem, size = 0x10000, scoped, tag = 'output window, operand 0, single buffered']
    %8 = vsyncpa [#allocation3], 0
    %9 = vsyncpa [#allocation4], 0
    // Predicated region
    $region2: #{tpu_custom_call.1} parent=1 // pred_check
      _
    $region3: #{tpu_custom_call.1} parent=1 // pred_check_branch
      %11 = sbr.rel (0) target = $region5
    $region4: #{tpu_custom_call.1} parent=1 // pred_region
      _
    $region5: #{tpu_custom_call.1} parent=1 // pred_fallthru
      _
    // Predicated region
    $region6: #{tpu_custom_call.1} parent=1 // pred_check
      _
    $region7: #{tpu_custom_call.1} parent=1 // pred_check_branch
      %13 = sbr.rel (0) target = $region9
    $region8: #{tpu_custom_call.1} parent=1 // pred_region
      _
    $region9: #{tpu_custom_call.1} parent=1 // pred_fallthru
      _
    // Predicated region
    $region10: #{tpu_custom_call.1} parent=1 // pred_check
      _
    $region11: #{tpu_custom_call.1} parent=1 // pred_check_branch
      %15 = sbr.rel (0) target = $region13
    $region12: #{tpu_custom_call.1} parent=1 // pred_region
      %s17 = ssub.s32 1024, 1024
      %18 = vsyncadd [#allocation3], %s17
      %s19 = sshll.u32 [#allocation2], 4
      %s20 = int_to_ptr.vmem [resolvable:$true] %s19
      %25 = dma.hbm_to_vmem [thread:$0]  %s2, 1024, %s20, [#allocation3], 64, 64, 4
    $region13: #{tpu_custom_call.1} parent=1 // pred_fallthru
      _
    // Predicated region
    $region14: #{tpu_custom_call.1} parent=1 // pred_check
      _
    $region15: #{tpu_custom_call.1} parent=1 // pred_check_branch
      %27 = sbr.rel (0) target = $region17
    $region16: #{tpu_custom_call.1} parent=1 // pred_region
      %28 = dma.done [#allocation3], 1024
    $region17: #{tpu_custom_call.1} parent=1 // pred_fallthru
      _
    %v30 = vld [vmem:[%s0] sm:$0xff]
    %v31 = vld [vmem:[%s0 + $0x8] sm:$0xff]
    %v32 = vld [vmem:[%s0 + $0x10] sm:$0xff]
    %v33 = vld [vmem:[%s0 + $0x18] sm:$0xff]
    %v34 = vld [vmem:[%s0 + $0x20] sm:$0xff]
    %v35 = vld [vmem:[%s0 + $0x28] sm:$0xff]
    %v36 = vld [vmem:[%s0 + $0x30] sm:$0xff]
    %v37 = vld [vmem:[%s0 + $0x38] sm:$0xff]
    %v38 = vld [vmem:[%s0 + $0x40] sm:$0xff]
    %v39 = vld [vmem:[%s0 + $0x48] sm:$0xff]
    %v40 = vld [vmem:[%s0 + $0x50] sm:$0xff]
    %v41 = vld [vmem:[%s0 + $0x58] sm:$0xff]
    %v42 = vld [vmem:[%s0 + $0x60] sm:$0xff]
    %v43 = vld [vmem:[%s0 + $0x68] sm:$0xff]
    %v44 = vld [vmem:[%s0 + $0x70] sm:$0xff]
    %v45 = vld [vmem:[%s0 + $0x78] sm:$0xff]
    %v46 = vld [vmem:[%s0 + $0x80] sm:$0xff]
    %v47 = vld [vmem:[%s0 + $0x88] sm:$0xff]
    %v48 = vld [vmem:[%s0 + $0x90] sm:$0xff]
    %v49 = vld [vmem:[%s0 + $0x98] sm:$0xff]
    %v50 = vld [vmem:[%s0 + $0xa0] sm:$0xff]
    %v51 = vld [vmem:[%s0 + $0xa8] sm:$0xff]
    %v52 = vld [vmem:[%s0 + $0xb0] sm:$0xff]
    %v53 = vld [vmem:[%s0 + $0xb8] sm:$0xff]
    %v54 = vld [vmem:[%s0 + $0xc0] sm:$0xff]
    %v55 = vld [vmem:[%s0 + $0xc8] sm:$0xff]
    %v56 = vld [vmem:[%s0 + $0xd0] sm:$0xff]
    %v57 = vld [vmem:[%s0 + $0xd8] sm:$0xff]
    %v58 = vld [vmem:[%s0 + $0xe0] sm:$0xff]
    %v59 = vld [vmem:[%s0 + $0xe8] sm:$0xff]
    %v60 = vld [vmem:[%s0 + $0xf0] sm:$0xff]
    %v61 = vld [vmem:[%s0 + $0xf8] sm:$0xff]
    %v62 = vld [vmem:[%s1] sm:$0xff]
    %v63 = vld [vmem:[%s1 + $0x8] sm:$0xff]
    %v64 = vld [vmem:[%s1 + $0x10] sm:$0xff]
    %v65 = vld [vmem:[%s1 + $0x18] sm:$0xff]
    %v66 = vld [vmem:[%s1 + $0x20] sm:$0xff]
    %v67 = vld [vmem:[%s1 + $0x28] sm:$0xff]
    %v68 = vld [vmem:[%s1 + $0x30] sm:$0xff]
    %v69 = vld [vmem:[%s1 + $0x38] sm:$0xff]
    %v70 = vld [vmem:[%s1 + $0x40] sm:$0xff]
    %v71 = vld [vmem:[%s1 + $0x48] sm:$0xff]
    %v72 = vld [vmem:[%s1 + $0x50] sm:$0xff]
    %v73 = vld [vmem:[%s1 + $0x58] sm:$0xff]
    %v74 = vld [vmem:[%s1 + $0x60] sm:$0xff]
    %v75 = vld [vmem:[%s1 + $0x68] sm:$0xff]
    %v76 = vld [vmem:[%s1 + $0x70] sm:$0xff]
    %v77 = vld [vmem:[%s1 + $0x78] sm:$0xff]
    %v78 = vld [vmem:[%s1 + $0x80] sm:$0xff]
    %v79 = vld [vmem:[%s1 + $0x88] sm:$0xff]
    %v80 = vld [vmem:[%s1 + $0x90] sm:$0xff]
    %v81 = vld [vmem:[%s1 + $0x98] sm:$0xff]
    %v82 = vld [vmem:[%s1 + $0xa0] sm:$0xff]
    %v83 = vld [vmem:[%s1 + $0xa8] sm:$0xff]
    %v84 = vld [vmem:[%s1 + $0xb0] sm:$0xff]
    %v85 = vld [vmem:[%s1 + $0xb8] sm:$0xff]
    %v86 = vld [vmem:[%s1 + $0xc0] sm:$0xff]
    %v87 = vld [vmem:[%s1 + $0xc8] sm:$0xff]
    %v88 = vld [vmem:[%s1 + $0xd0] sm:$0xff]
    %v89 = vld [vmem:[%s1 + $0xd8] sm:$0xff]
    %v90 = vld [vmem:[%s1 + $0xe0] sm:$0xff]
    %v91 = vld [vmem:[%s1 + $0xe8] sm:$0xff]
    %v92 = vld [vmem:[%s1 + $0xf0] sm:$0xff]
    %v93 = vld [vmem:[%s1 + $0xf8] sm:$0xff]
    %95 = vset.pattern.permute.xlu0 0
    %96 = vperm.xlu0 %95, %v62
    %v97 = vpop.permute.xlu0 %96
    %100 = vset.pattern.permute.xlu0 0
    %101 = vperm.xlu0 %100, %v63
    %v102 = vpop.permute.xlu0 %101
    %105 = vset.pattern.permute.xlu0 0
    %106 = vperm.xlu0 %105, %v64
    %v107 = vpop.permute.xlu0 %106
    %110 = vset.pattern.permute.xlu0 0
    %111 = vperm.xlu0 %110, %v65
    %v112 = vpop.permute.xlu0 %111
    %115 = vset.pattern.permute.xlu0 0
    %116 = vperm.xlu0 %115, %v66
    %v117 = vpop.permute.xlu0 %116
    %120 = vset.pattern.permute.xlu0 0
    %121 = vperm.xlu0 %120, %v67
    %v122 = vpop.permute.xlu0 %121
    %125 = vset.pattern.permute.xlu0 0
    %126 = vperm.xlu0 %125, %v68
    %v127 = vpop.permute.xlu0 %126
    %130 = vset.pattern.permute.xlu0 0
    %131 = vperm.xlu0 %130, %v69
    %v132 = vpop.permute.xlu0 %131
    %135 = vset.pattern.permute.xlu0 0
    %136 = vperm.xlu0 %135, %v70
    %v137 = vpop.permute.xlu0 %136
    %140 = vset.pattern.permute.xlu0 0
    %141 = vperm.xlu0 %140, %v71
    %v142 = vpop.permute.xlu0 %141
    %145 = vset.pattern.permute.xlu0 0
    %146 = vperm.xlu0 %145, %v72
    %v147 = vpop.permute.xlu0 %146
    %150 = vset.pattern.permute.xlu0 0
    %151 = vperm.xlu0 %150, %v73
    %v152 = vpop.permute.xlu0 %151
    %155 = vset.pattern.permute.xlu0 0
    %156 = vperm.xlu0 %155, %v74
    %v157 = vpop.permute.xlu0 %156
    %160 = vset.pattern.permute.xlu0 0
    %161 = vperm.xlu0 %160, %v75
    %v162 = vpop.permute.xlu0 %161
    %165 = vset.pattern.permute.xlu0 0
    %166 = vperm.xlu0 %165, %v76
    %v167 = vpop.permute.xlu0 %166
    %170 = vset.pattern.permute.xlu0 0
    %171 = vperm.xlu0 %170, %v77
    %v172 = vpop.permute.xlu0 %171
    %175 = vset.pattern.permute.xlu0 0
    %176 = vperm.xlu0 %175, %v78
    %v177 = vpop.permute.xlu0 %176
    %180 = vset.pattern.permute.xlu0 0
    %181 = vperm.xlu0 %180, %v79
    %v182 = vpop.permute.xlu0 %181
    %185 = vset.pattern.permute.xlu0 0
    %186 = vperm.xlu0 %185, %v80
    %v187 = vpop.permute.xlu0 %186
    %190 = vset.pattern.permute.xlu0 0
    %191 = vperm.xlu0 %190, %v81
    %v192 = vpop.permute.xlu0 %191
    %195 = vset.pattern.permute.xlu0 0
    %196 = vperm.xlu0 %195, %v82
    %v197 = vpop.permute.xlu0 %196
    %200 = vset.pattern.permute.xlu0 0
    %201 = vperm.xlu0 %200, %v83
    %v202 = vpop.permute.xlu0 %201
    %205 = vset.pattern.permute.xlu0 0
    %206 = vperm.xlu0 %205, %v84
    %v207 = vpop.permute.xlu0 %206
    %210 = vset.pattern.permute.xlu0 0
    %211 = vperm.xlu0 %210, %v85
    %v212 = vpop.permute.xlu0 %211
    %215 = vset.pattern.permute.xlu0 0
    %216 = vperm.xlu0 %215, %v86
    %v217 = vpop.permute.xlu0 %216
    %220 = vset.pattern.permute.xlu0 0
    %221 = vperm.xlu0 %220, %v87
    %v222 = vpop.permute.xlu0 %221
    %225 = vset.pattern.permute.xlu0 0
    %226 = vperm.xlu0 %225, %v88
    %v227 = vpop.permute.xlu0 %226
    %230 = vset.pattern.permute.xlu0 0
    %231 = vperm.xlu0 %230, %v89
    %v232 = vpop.permute.xlu0 %231
    %235 = vset.pattern.permute.xlu0 0
    %236 = vperm.xlu0 %235, %v90
    %v237 = vpop.permute.xlu0 %236
    %240 = vset.pattern.permute.xlu0 0
    %241 = vperm.xlu0 %240, %v91
    %v242 = vpop.permute.xlu0 %241
    %245 = vset.pattern.permute.xlu0 0
    %246 = vperm.xlu0 %245, %v92
    %v247 = vpop.permute.xlu0 %246
    %250 = vset.pattern.permute.xlu0 0
    %251 = vperm.xlu0 %250, %v93
    %v252 = vpop.permute.xlu0 %251
    %v254 = vmul.f32 %v30, %v97
    %v255 = vmul.f32 %v31, %v102
    %v256 = vmul.f32 %v32, %v107
    %v257 = vmul.f32 %v33, %v112
    %v258 = vmul.f32 %v34, %v117
    %v259 = vmul.f32 %v35, %v122
    %v260 = vmul.f32 %v36, %v127
    %v261 = vmul.f32 %v37, %v132
    %v262 = vmul.f32 %v38, %v137
    %v263 = vmul.f32 %v39, %v142
    %v264 = vmul.f32 %v40, %v147
    %v265 = vmul.f32 %v41, %v152
    %v266 = vmul.f32 %v42, %v157
    %v267 = vmul.f32 %v43, %v162
    %v268 = vmul.f32 %v44, %v167
    %v269 = vmul.f32 %v45, %v172
    %v270 = vmul.f32 %v46, %v177
    %v271 = vmul.f32 %v47, %v182
    %v272 = vmul.f32 %v48, %v187
    %v273 = vmul.f32 %v49, %v192
    %v274 = vmul.f32 %v50, %v197
    %v275 = vmul.f32 %v51, %v202
    %v276 = vmul.f32 %v52, %v207
    %v277 = vmul.f32 %v53, %v212
    %v278 = vmul.f32 %v54, %v217
    %v279 = vmul.f32 %v55, %v222
    %v280 = vmul.f32 %v56, %v227
    %v281 = vmul.f32 %v57, %v232
    %v282 = vmul.f32 %v58, %v237
    %v283 = vmul.f32 %v59, %v242
    %v284 = vmul.f32 %v60, %v247
    %v285 = vmul.f32 %v61, %v252
    %v286 = vpack.c.bf16 %v255, %v254
    %v287 = vpack.c.bf16 %v257, %v256
    %v288 = vpack.c.bf16 %v259, %v258
    %v289 = vpack.c.bf16 %v261, %v260
    %v290 = vpack.c.bf16 %v263, %v262
    %v291 = vpack.c.bf16 %v265, %v264
    %v292 = vpack.c.bf16 %v267, %v266
    %v293 = vpack.c.bf16 %v269, %v268
    %v294 = vpack.c.bf16 %v271, %v270
    %v295 = vpack.c.bf16 %v273, %v272
    %v296 = vpack.c.bf16 %v275, %v274
    %v297 = vpack.c.bf16 %v277, %v276
    %v298 = vpack.c.bf16 %v279, %v278
    %v299 = vpack.c.bf16 %v281, %v280
    %v300 = vpack.c.bf16 %v283, %v282
    %v301 = vpack.c.bf16 %v285, %v284
    %v302 = vld [vmem:[#allocation2] sm:$0xf]
    %v303 = vld [vmem:[#allocation2 + $0x4] sm:$0xf]
    %v304 = vld [vmem:[#allocation2 + $0x8] sm:$0xf]
    %v305 = vld [vmem:[#allocation2 + $0xc] sm:$0xf]
    %v306 = vld [vmem:[#allocation2 + $0x10] sm:$0xf]
    %v307 = vld [vmem:[#allocation2 + $0x14] sm:$0xf]
    %v308 = vld [vmem:[#allocation2 + $0x18] sm:$0xf]
    %v309 = vld [vmem:[#allocation2 + $0x1c] sm:$0xf]
    %v310 = vld [vmem:[#allocation2 + $0x20] sm:$0xf]
    %v311 = vld [vmem:[#allocation2 + $0x24] sm:$0xf]
    %v312 = vld [vmem:[#allocation2 + $0x28] sm:$0xf]
    %v313 = vld [vmem:[#allocation2 + $0x2c] sm:$0xf]
    %v314 = vld [vmem:[#allocation2 + $0x30] sm:$0xf]
    %v315 = vld [vmem:[#allocation2 + $0x34] sm:$0xf]
    %v316 = vld [vmem:[#allocation2 + $0x38] sm:$0xf]
    %v317 = vld [vmem:[#allocation2 + $0x3c] sm:$0xf]
    %v334 = vunpack.c.l.b16 %v302
    %v335 = vunpack.c.l.b16 %v303
    %v336 = vunpack.c.l.b16 %v304
    %v337 = vunpack.c.l.b16 %v305
    %v338 = vunpack.c.l.b16 %v306
    %v339 = vunpack.c.l.b16 %v307
    %v340 = vunpack.c.l.b16 %v308
    %v341 = vunpack.c.l.b16 %v309
    %v342 = vunpack.c.l.b16 %v310
    %v343 = vunpack.c.l.b16 %v311
    %v344 = vunpack.c.l.b16 %v312
    %v345 = vunpack.c.l.b16 %v313
    %v346 = vunpack.c.l.b16 %v314
    %v347 = vunpack.c.l.b16 %v315
    %v348 = vunpack.c.l.b16 %v316
    %v349 = vunpack.c.l.b16 %v317
    %v350 = vpack.c.b16 %v335, %v334
    %v351 = vpack.c.b16 %v337, %v336
    %v352 = vpack.c.b16 %v339, %v338
    %v353 = vpack.c.b16 %v341, %v340
    %v354 = vpack.c.b16 %v343, %v342
    %v355 = vpack.c.b16 %v345, %v344
    %v356 = vpack.c.b16 %v347, %v346
    %v357 = vpack.c.b16 %v349, %v348
    %366 = vmatprep.subr.bf16.mxu0 0
    %367 = vmatpush1.bf16.msra.mxu0 %v357
    %368 = vmatprep.subr.bf16.mxu0 0
    %369 = vmatpush1.bf16.msra.mxu0 %v356
    %370 = vmatprep.subr.bf16.mxu0 0
    %371 = vmatpush1.bf16.msra.mxu0 %v355
    %372 = vmatprep.subr.bf16.mxu0 0
    %373 = vmatpush1.bf16.msra.mxu0 %v354
    %374 = vmatprep.subr.bf16.mxu0 0
    %375 = vmatpush1.bf16.msra.mxu0 %v353
    %376 = vmatprep.subr.bf16.mxu0 0
    %377 = vmatpush1.bf16.msra.mxu0 %v352
    %378 = vmatprep.subr.bf16.mxu0 0
    %379 = vmatpush1.bf16.msra.mxu0 %v351
    %380 = vmatprep.subr.bf16.mxu0 0
    %381 = vmatpush1.bf16.msra.mxu0 %v350
    %382 = vmatprep.subr.bf16.mxu0 0
    %383 = vmatpush2.bf16.msra.mxu0 0
    %384 = vmatprep.subr.bf16.mxu0 0
    %385 = vmatpush2.bf16.msra.mxu0 0
    %386 = vmatprep.subr.bf16.mxu0 0
    %387 = vmatpush2.bf16.msra.mxu0 0
    %388 = vmatprep.subr.bf16.mxu0 0
    %389 = vmatpush2.bf16.msra.mxu0 0
    %390 = vmatprep.subr.bf16.mxu0 0
    %391 = vmatpush2.bf16.msra.mxu0 0
    %392 = vmatprep.subr.bf16.mxu0 0
    %393 = vmatpush2.bf16.msra.mxu0 0
    %394 = vmatprep.subr.bf16.mxu0 0
    %395 = vmatpush2.bf16.msra.mxu0 0
    %396 = vmatprep.subr.bf16.mxu0 0
    %397 = vmatpush2.bf16.msra.mxu0 0
    %398 = vmatprep.mubr.bf16.mxu0 0
    %399 = vmatmul.mubr.bf16.gmra.mxu0 %v286
    %v400 = vpop.f32.mrf.mxu0
    %v401 = vadd.f32 0.0, %v400
    %v402 = vpop.f32.mrf.mxu0
    %v403 = vpop.f32.mrf.mxu0
    %v404 = vadd.f32 0.0, %v403
    %v405 = vpop.f32.mrf.mxu0
    %406 = vmatprep.mubr.bf16.mxu0 0
    %407 = vmatmul.mubr.bf16.gmra.mxu0 %v287
    %v408 = vpop.f32.mrf.mxu0
    %v409 = vadd.f32 0.0, %v408
    %v410 = vpop.f32.mrf.mxu0
    %v411 = vpop.f32.mrf.mxu0
    %v412 = vadd.f32 0.0, %v411
    %v413 = vpop.f32.mrf.mxu0
    %414 = vmatprep.mubr.bf16.mxu0 0
    %415 = vmatmul.mubr.bf16.gmra.mxu0 %v288
    %v416 = vpop.f32.mrf.mxu0
    %v417 = vadd.f32 0.0, %v416
    %v418 = vpop.f32.mrf.mxu0
    %v419 = vpop.f32.mrf.mxu0
    %v420 = vadd.f32 0.0, %v419
    %v421 = vpop.f32.mrf.mxu0
    %422 = vmatprep.mubr.bf16.mxu0 0
    %423 = vmatmul.mubr.bf16.gmra.mxu0 %v289
    %v424 = vpop.f32.mrf.mxu0
    %v425 = vadd.f32 0.0, %v424
    %v426 = vpop.f32.mrf.mxu0
    %v427 = vpop.f32.mrf.mxu0
    %v428 = vadd.f32 0.0, %v427
    %v429 = vpop.f32.mrf.mxu0
    %430 = vmatprep.mubr.bf16.mxu0 0
    %431 = vmatmul.mubr.bf16.gmra.mxu0 %v290
    %v432 = vpop.f32.mrf.mxu0
    %v433 = vadd.f32 0.0, %v432
    %v434 = vpop.f32.mrf.mxu0
    %v435 = vpop.f32.mrf.mxu0
    %v436 = vadd.f32 0.0, %v435
    %v437 = vpop.f32.mrf.mxu0
    %438 = vmatprep.mubr.bf16.mxu0 0
    %439 = vmatmul.mubr.bf16.gmra.mxu0 %v291
    %v440 = vpop.f32.mrf.mxu0
    %v441 = vadd.f32 0.0, %v440
    %v442 = vpop.f32.mrf.mxu0
    %v443 = vpop.f32.mrf.mxu0
    %v444 = vadd.f32 0.0, %v443
    %v445 = vpop.f32.mrf.mxu0
    %446 = vmatprep.mubr.bf16.mxu0 0
    %447 = vmatmul.mubr.bf16.gmra.mxu0 %v292
    %v448 = vpop.f32.mrf.mxu0
    %v449 = vadd.f32 0.0, %v448
    %v450 = vpop.f32.mrf.mxu0
    %v451 = vpop.f32.mrf.mxu0
    %v452 = vadd.f32 0.0, %v451
    %v453 = vpop.f32.mrf.mxu0
    %454 = vmatprep.mubr.bf16.mxu0 0
    %455 = vmatmul.mubr.bf16.gmra.mxu0 %v293
    %v456 = vpop.f32.mrf.mxu0
    %v457 = vadd.f32 0.0, %v456
    %v458 = vpop.f32.mrf.mxu0
    %v459 = vpop.f32.mrf.mxu0
    %v460 = vadd.f32 0.0, %v459
    %v461 = vpop.f32.mrf.mxu0
    %462 = vmatprep.mubr.bf16.mxu0 0
    %463 = vmatmul.mubr.bf16.gmra.mxu0 %v294
    %v464 = vpop.f32.mrf.mxu0
    %v465 = vadd.f32 0.0, %v464
    %v466 = vpop.f32.mrf.mxu0
    %v467 = vpop.f32.mrf.mxu0
    %v468 = vadd.f32 0.0, %v467
    %v469 = vpop.f32.mrf.mxu0
    %470 = vmatprep.mubr.bf16.mxu0 0
    %471 = vmatmul.mubr.bf16.gmra.mxu0 %v295
    %v472 = vpop.f32.mrf.mxu0
    %v473 = vadd.f32 0.0, %v472
    %v474 = vpop.f32.mrf.mxu0
    %v475 = vpop.f32.mrf.mxu0
    %v476 = vadd.f32 0.0, %v475
    %v477 = vpop.f32.mrf.mxu0
    %478 = vmatprep.mubr.bf16.mxu0 0
    %479 = vmatmul.mubr.bf16.gmra.mxu0 %v296
    %v480 = vpop.f32.mrf.mxu0
    %v481 = vadd.f32 0.0, %v480
    %v482 = vpop.f32.mrf.mxu0
    %v483 = vpop.f32.mrf.mxu0
    %v484 = vadd.f32 0.0, %v483
    %v485 = vpop.f32.mrf.mxu0
    %486 = vmatprep.mubr.bf16.mxu0 0
    %487 = vmatmul.mubr.bf16.gmra.mxu0 %v297
    %v488 = vpop.f32.mrf.mxu0
    %v489 = vadd.f32 0.0, %v488
    %v490 = vpop.f32.mrf.mxu0
    %v491 = vpop.f32.mrf.mxu0
    %v492 = vadd.f32 0.0, %v491
    %v493 = vpop.f32.mrf.mxu0
    %494 = vmatprep.mubr.bf16.mxu0 0
    %495 = vmatmul.mubr.bf16.gmra.mxu0 %v298
    %v496 = vpop.f32.mrf.mxu0
    %v497 = vadd.f32 0.0, %v496
    %v498 = vpop.f32.mrf.mxu0
    %v499 = vpop.f32.mrf.mxu0
    %v500 = vadd.f32 0.0, %v499
    %v501 = vpop.f32.mrf.mxu0
    %502 = vmatprep.mubr.bf16.mxu0 0
    %503 = vmatmul.mubr.bf16.gmra.mxu0 %v299
    %v504 = vpop.f32.mrf.mxu0
    %v505 = vadd.f32 0.0, %v504
    %v506 = vpop.f32.mrf.mxu0
    %v507 = vpop.f32.mrf.mxu0
    %v508 = vadd.f32 0.0, %v507
    %v509 = vpop.f32.mrf.mxu0
    %510 = vmatprep.mubr.bf16.mxu0 0
    %511 = vmatmul.mubr.bf16.gmra.mxu0 %v300
    %v512 = vpop.f32.mrf.mxu0
    %v513 = vadd.f32 0.0, %v512
    %v514 = vpop.f32.mrf.mxu0
    %v515 = vpop.f32.mrf.mxu0
    %v516 = vadd.f32 0.0, %v515
    %v517 = vpop.f32.mrf.mxu0
    %518 = vmatprep.mubr.bf16.mxu0 0
    %519 = vmatmul.mubr.bf16.gmra.mxu0 %v301
    %v520 = vpop.f32.mrf.mxu0
    %v521 = vadd.f32 0.0, %v520
    %v522 = vpop.f32.mrf.mxu0
    %v523 = vpop.f32.mrf.mxu0
    %v524 = vadd.f32 0.0, %v523
    %v525 = vpop.f32.mrf.mxu0
    %526 = vdwg.mxu0
    %v527 = vpack.c.bf16 %v404, %v401
    %v528 = vpack.c.bf16 %v412, %v409
    %v529 = vpack.c.bf16 %v420, %v417
    %v530 = vpack.c.bf16 %v428, %v425
    %v531 = vpack.c.bf16 %v436, %v433
    %v532 = vpack.c.bf16 %v444, %v441
    %v533 = vpack.c.bf16 %v452, %v449
    %v534 = vpack.c.bf16 %v460, %v457
    %v535 = vpack.c.bf16 %v468, %v465
    %v536 = vpack.c.bf16 %v476, %v473
    %v537 = vpack.c.bf16 %v484, %v481
    %v538 = vpack.c.bf16 %v492, %v489
    %v539 = vpack.c.bf16 %v500, %v497
    %v540 = vpack.c.bf16 %v508, %v505
    %v541 = vpack.c.bf16 %v516, %v513
    %v542 = vpack.c.bf16 %v524, %v521
    %v559 = vunpack.c.l.b16 %v527
    %v560 = vunpack.c.h.b16 %v527
    %v561 = vunpack.c.l.b16 %v528
    %v562 = vunpack.c.h.b16 %v528
    %v563 = vunpack.c.l.b16 %v529
    %v564 = vunpack.c.h.b16 %v529
    %v565 = vunpack.c.l.b16 %v530
    %v566 = vunpack.c.h.b16 %v530
    %v567 = vunpack.c.l.b16 %v531
    %v568 = vunpack.c.h.b16 %v531
    %v569 = vunpack.c.l.b16 %v532
    %v570 = vunpack.c.h.b16 %v532
    %v571 = vunpack.c.l.b16 %v533
    %v572 = vunpack.c.h.b16 %v533
    %v573 = vunpack.c.l.b16 %v534
    %v574 = vunpack.c.h.b16 %v534
    %v575 = vunpack.c.l.b16 %v535
    %v576 = vunpack.c.h.b16 %v535
    %v577 = vunpack.c.l.b16 %v536
    %v578 = vunpack.c.h.b16 %v536
    %v579 = vunpack.c.l.b16 %v537
    %v580 = vunpack.c.h.b16 %v537
    %v581 = vunpack.c.l.b16 %v538
    %v582 = vunpack.c.h.b16 %v538
    %v583 = vunpack.c.l.b16 %v539
    %v584 = vunpack.c.h.b16 %v539
    %v585 = vunpack.c.l.b16 %v540
    %v586 = vunpack.c.h.b16 %v540
    %v587 = vunpack.c.l.b16 %v541
    %v588 = vunpack.c.h.b16 %v541
    %v589 = vunpack.c.l.b16 %v542
    %v590 = vunpack.c.h.b16 %v542
    %v591 = vpack.c.b16 %v559, %v559
    %v592 = vpack.c.b16 %v560, %v560
    %v593 = vpack.c.b16 %v561, %v561
    %v594 = vpack.c.b16 %v562, %v562
    %v595 = vpack.c.b16 %v563, %v563
    %v596 = vpack.c.b16 %v564, %v564
    %v597 = vpack.c.b16 %v565, %v565
    %v598 = vpack.c.b16 %v566, %v566
    %v599 = vpack.c.b16 %v567, %v567
    %v600 = vpack.c.b16 %v568, %v568
    %v601 = vpack.c.b16 %v569, %v569
    %v602 = vpack.c.b16 %v570, %v570
    %v603 = vpack.c.b16 %v571, %v571
    %v604 = vpack.c.b16 %v572, %v572
    %v605 = vpack.c.b16 %v573, %v573
    %v606 = vpack.c.b16 %v574, %v574
    %v607 = vpack.c.b16 %v575, %v575
    %v608 = vpack.c.b16 %v576, %v576
    %v609 = vpack.c.b16 %v577, %v577
    %v610 = vpack.c.b16 %v578, %v578
    %v611 = vpack.c.b16 %v579, %v579
    %v612 = vpack.c.b16 %v580, %v580
    %v613 = vpack.c.b16 %v581, %v581
    %v614 = vpack.c.b16 %v582, %v582
    %v615 = vpack.c.b16 %v583, %v583
    %v616 = vpack.c.b16 %v584, %v584
    %v617 = vpack.c.b16 %v585, %v585
    %v618 = vpack.c.b16 %v586, %v586
    %v619 = vpack.c.b16 %v587, %v587
    %v620 = vpack.c.b16 %v588, %v588
    %v621 = vpack.c.b16 %v589, %v589
    %v622 = vpack.c.b16 %v590, %v590
    %655 = vst [vmem:[#allocation5] sm:$0xf] %v591
    %656 = vst [vmem:[#allocation5 + $0x4] sm:$0xf] %v592
    %657 = vst [vmem:[#allocation5 + $0x8] sm:$0xf] %v593
    %658 = vst [vmem:[#allocation5 + $0xc] sm:$0xf] %v594
    %659 = vst [vmem:[#allocation5 + $0x10] sm:$0xf] %v595
    %660 = vst [vmem:[#allocation5 + $0x14] sm:$0xf] %v596
    %661 = vst [vmem:[#allocation5 + $0x18] sm:$0xf] %v597
    %662 = vst [vmem:[#allocation5 + $0x1c] sm:$0xf] %v598
    %663 = vst [vmem:[#allocation5 + $0x20] sm:$0xf] %v599
    %664 = vst [vmem:[#allocation5 + $0x24] sm:$0xf] %v600
    %665 = vst [vmem:[#allocation5 + $0x28] sm:$0xf] %v601
    %666 = vst [vmem:[#allocation5 + $0x2c] sm:$0xf] %v602
    %667 = vst [vmem:[#allocation5 + $0x30] sm:$0xf] %v603
    %668 = vst [vmem:[#allocation5 + $0x34] sm:$0xf] %v604
    %669 = vst [vmem:[#allocation5 + $0x38] sm:$0xf] %v605
    %670 = vst [vmem:[#allocation5 + $0x3c] sm:$0xf] %v606
    %671 = vst [vmem:[#allocation5 + $0x40] sm:$0xf] %v607
    %672 = vst [vmem:[#allocation5 + $0x44] sm:$0xf] %v608
    %673 = vst [vmem:[#allocation5 + $0x48] sm:$0xf] %v609
    %674 = vst [vmem:[#allocation5 + $0x4c] sm:$0xf] %v610
    %675 = vst [vmem:[#allocation5 + $0x50] sm:$0xf] %v611
    %676 = vst [vmem:[#allocation5 + $0x54] sm:$0xf] %v612
    %677 = vst [vmem:[#allocation5 + $0x58] sm:$0xf] %v613
    %678 = vst [vmem:[#allocation5 + $0x5c] sm:$0xf] %v614
    %679 = vst [vmem:[#allocation5 + $0x60] sm:$0xf] %v615
    %680 = vst [vmem:[#allocation5 + $0x64] sm:$0xf] %v616
    %681 = vst [vmem:[#allocation5 + $0x68] sm:$0xf] %v617
    %682 = vst [vmem:[#allocation5 + $0x6c] sm:$0xf] %v618
    %683 = vst [vmem:[#allocation5 + $0x70] sm:$0xf] %v619
    %684 = vst [vmem:[#allocation5 + $0x74] sm:$0xf] %v620
    %685 = vst [vmem:[#allocation5 + $0x78] sm:$0xf] %v621
    %686 = vst [vmem:[#allocation5 + $0x7c] sm:$0xf] %v622
    // Predicated region
    $region18: #{tpu_custom_call.1} parent=1 // pred_check
      _
    $region19: #{tpu_custom_call.1} parent=1 // pred_check_branch
      %688 = sbr.rel (0) target = $region21
    $region20: #{tpu_custom_call.1} parent=1 // pred_region
      %s690 = ssub.s32 2048, 2048
      %691 = vsyncadd [#allocation4], %s690
      %s692 = sshll.u32 [#allocation5], 4
      %s693 = int_to_ptr.vmem [resolvable:$true] %s692
      %698 = dma.vmem_to_hbm [thread:$0]  %s693, 2048, %s3, [#allocation4], 64, 64, 4
    $region21: #{tpu_custom_call.1} parent=1 // pred_fallthru
      _
    // Predicated region
    $region22: #{tpu_custom_call.1} parent=1 // pred_check
      _
    $region23: #{tpu_custom_call.1} parent=1 // pred_check_branch
      %700 = sbr.rel (0) target = $region25
    $region24: #{tpu_custom_call.1} parent=1 // pred_region
      %701 = dma.done [#allocation4], 2048
    $region25: #{tpu_custom_call.1} parent=1 // pred_fallthru
      _
    %702 = vsyncpa [#allocation3], 1
    %703 = vsyncpa [#allocation4], 1

</llo_original>
